<compile_context>
chip_gen: v7x
topology: tpu7x:2x2x1
jax: 0.10.0
libtpu: 0.0.40
codegen_flags: <defaults>
</compile_context>

<pallas_src>
import functools

import jax
import jax.numpy as jnp
from jax.experimental import pallas as pl
from jax.experimental.pallas import tpu as pltpu


def _round_up(x, m):
    return ((x + m - 1) // m) * m


def _mdn_kernel(n_layers1, n_gaussians, sigma_offset, *refs):
    # refs layout:
    #   x_ref,
    #   (w_i, b_i) * n_layers1        -- z_h trunk (VMEM-resident)
    #   w_heads, b_heads              -- fused pi|mu|sigma head (lane-padded)
    #   out_ref                       -- (TB, 128) fused output slab
    x_ref = refs[0]
    trunk = refs[1:1 + 2 * n_layers1]
    wh_ref, bh_ref = refs[1 + 2 * n_layers1:3 + 2 * n_layers1]
    out_ref = refs[-1]

    # MXU operand dtype is whatever the prepared weights use (bf16 default).
    mxu_dtype = trunk[0].dtype

    # z_h trunk: repeated Linear + Tanh.  MXU accumulates in f32; bias-add and
    # tanh stay in f32 (v5e VPU/EUP have no bf16 path).
    h = x_ref[...]
    for layer in range(n_layers1):
        w = trunk[2 * layer][...]
        b = trunk[2 * layer + 1][...]
        acc = jnp.dot(h.astype(mxu_dtype), w,
                      preferred_element_type=jnp.float32)
        h = jnp.tanh(acc + b)

    # Single fused head matmul: columns [0,ng) = pi logits, [ng,2ng) = mu,
    # [2ng,3ng) = sigma pre-activation, rest = zero padding.
    z = jnp.dot(h.astype(mxu_dtype), wh_ref[...],
                preferred_element_type=jnp.float32) + bh_ref[...]

    ng = n_gaussians
    col = jax.lax.broadcasted_iota(jnp.int32, z.shape, 1)
    pi_mask = col < ng
    mu_mask = (col >= ng) & (col < 2 * ng)
    sg_mask = (col >= 2 * ng) & (col < 3 * ng)

    # One full-slab exp for both softmax numerator (pi cols, max-shifted for
    # stability) and sigma activation (sigma cols, unshifted).  exp() of the
    # mu / pad columns is discarded by the masked selects below and is never
    # multiplied, so a potential +inf there stays contained (no inf*0 -> NaN).
    logits = jnp.where(pi_mask, z, -jnp.inf)
    m = jnp.max(logits, axis=-1, keepdims=True)
    t = jnp.exp(z - jnp.where(pi_mask, m, 0.0))

    e_pi = jnp.where(pi_mask, t, 0.0)
    denom = jnp.sum(e_pi, axis=-1, keepdims=True)
    # Exact divide on the (TB,1) column (negligible cost) so pi rows sum to 1.
    pi = e_pi * (1.0 / denom)                      # exactly 0 outside pi cols

    mu_cols = jnp.where(mu_mask, z, 0.0)
    sigma_cols = jnp.where(sg_mask, t + sigma_offset, 0.0)

    out_ref[...] = (pi + mu_cols + sigma_cols).astype(out_ref.dtype)


def _choose_block_batch(batch):
    # Tile sizing is driven by the ~0.35us/step pipeline overhead and HBM
    # roofline, NOT MXU width (v5e's MXU is 128-wide anyway) and NOT VMEM
    # capacity (a double-buffered (2048,128) f32 slab is ~2 MiB -- trivial on
    # all of v5e/v6e/v7x).  Target >= ~4 grid steps so prefetch/writeback
    # overlaps compute and the batch axis can be split across v7x's two
    # TensorCores; cap at 2048 rows per tile.
    if batch <= 32:
        return _round_up(batch, 8)
    tb = _round_up(-(-batch // 4), 8)        # ceil(batch/4), sublane-rounded
    return max(8, min(2048, tb))


def prepare_mdn_params(params, *, n_layers1, n_gaussians,
                       compute_dtype=jnp.bfloat16):
    """One-time fusion / lane-padding / dtype prep of the MDN parameters.

    `params` is the flat list [ (w,b)*n_layers1, w_pi,b_pi, w_mu,b_mu,
    w_sg,b_sg ] with weights (in_features, out_features), biases (1, out).
    Hoisted out of the per-call path (perf-review item): the .at[].set
    scatters and dtype casts run once here instead of every forward call.
    """
    ng = n_gaussians
    prepped = []
    for i in range(n_layers1):
        w, b = params[2 * i], params[2 * i + 1]
        prepped += [jnp.asarray(w, compute_dtype), jnp.asarray(b, jnp.float32)]

    w_pi, b_pi, w_mu, b_mu, w_sg, b_sg = params[2 * n_layers1:]
    n_hidden = w_pi.shape[0]
    out_pad = max(128, _round_up(3 * ng, 128))

    w_heads = jnp.zeros((n_hidden, out_pad), jnp.float32)
    w_heads = w_heads.at[:, 0:ng].set(w_pi)
    w_heads = w_heads.at[:, ng:2 * ng].set(w_mu)
    w_heads = w_heads.at[:, 2 * ng:3 * ng].set(w_sg)
    b_heads = jnp.zeros((1, out_pad), jnp.float32)
    b_heads = b_heads.at[:, 0:ng].set(b_pi.reshape(1, ng))
    b_heads = b_heads.at[:, ng:2 * ng].set(b_mu.reshape(1, ng))
    b_heads = b_heads.at[:, 2 * ng:3 * ng].set(b_sg.reshape(1, ng))

    prepped += [w_heads.astype(compute_dtype), b_heads]
    return tuple(prepped)


@functools.partial(
    jax.jit,
    static_argnames=("n_layers1", "n_gaussians", "sigma_offset", "out_dtype",
                     "block_batch"))
def mdn_forward(x, prepared, *, n_layers1, n_gaussians, sigma_offset=0.1,
                out_dtype=jnp.float32, block_batch=None):
    """Forward pass.  `prepared` is the output of prepare_mdn_params()."""
    batch, nx = x.shape
    ng = n_gaussians

    trunk = prepared[:2 * n_layers1]
    w_heads, b_heads = prepared[2 * n_layers1:]
    out_pad = w_heads.shape[1]

    # Read x in the MXU operand dtype (halves the x HBM read when bf16).
    x = x.astype(w_heads.dtype)

    # Batch tiling (pipelined, batch-parallel grid).
    tb = block_batch if block_batch is not None else _choose_block_batch(batch)
    tb = max(8, _round_up(tb, 8))
    b_pad = _round_up(max(batch, tb), tb)
    if b_pad != batch:
        x = jnp.pad(x, ((0, b_pad - batch), (0, 0)))
    grid = (b_pad // tb,)

    # Specs: x / output tiled over batch; weights resident (constant index map).
    x_spec = pl.BlockSpec((tb, nx), lambda i: (i, 0))
    resident = lambda shape: pl.BlockSpec(shape, lambda i: (0, 0))
    in_specs = ([x_spec] + [resident(p.shape) for p in trunk]
                + [resident(w_heads.shape), resident(b_heads.shape)])
    out_spec = pl.BlockSpec((tb, out_pad), lambda i: (i, 0))

    kernel = functools.partial(_mdn_kernel, n_layers1, ng, sigma_offset)
    out = pl.pallas_call(
        kernel,
        out_shape=jax.ShapeDtypeStruct((b_pad, out_pad), out_dtype),
        grid=grid,
        in_specs=in_specs,
        out_specs=out_spec,
        # "parallel" lets the batch axis be sharded across TensorCores on v7x;
        # v5e/v6e are single-TC so it is a no-op there.  (pltpu.CORE_PARALLEL
        # is the explicit alternative if plain "parallel" does not shard.)
        compiler_params=pltpu.CompilerParams(
            dimension_semantics=("parallel",)),
    )(x, *trunk, w_heads, b_heads)

    pi = out[:batch, 0:ng].astype(jnp.float32)
    mu = out[:batch, ng:2 * ng].astype(jnp.float32)
    sigma = out[:batch, 2 * ng:3 * ng].astype(jnp.float32)
    return pi, mu, sigma


def init_mdn_params(key, nx, n_hidden, n_gaussians, n_layers1):
    """Deterministic synthetic init (PyTorch-Linear-like uniform fan-in bound).

    Weights stored as (in_features, out_features); biases as (1, out_features).
    """
    params = []

    def linear(key, fan_in, fan_out):
        kw, kb = jax.random.split(key)
        bound = 1.0 / jnp.sqrt(jnp.float32(fan_in))
        w = jax.random.uniform(kw, (fan_in, fan_out), jnp.float32, -bound, bound)
        b = jax.random.uniform(kb, (1, fan_out), jnp.float32, -bound, bound)
        return w, b

    keys = jax.random.split(key, n_layers1 + 3)
    in_dim = nx
    for i in range(n_layers1):
        w, b = linear(keys[i], in_dim, n_hidden)
        params += [w, b]
        in_dim = n_hidden
    for k in keys[n_layers1:]:
        w, b = linear(k, n_hidden, n_gaussians)
        params += [w, b]
    return params


def mdn_reference(x, params, *, n_layers1, sigma_offset=0.1):
    """Pure-JAX f32 reference (HIGHEST matmul precision) for correctness."""
    hp = jax.lax.Precision.HIGHEST
    h = x
    idx = 0
    for _ in range(n_layers1):
        w, b = params[idx], params[idx + 1]
        idx += 2
        h = jnp.tanh(jnp.dot(h, w, precision=hp) + b)
    w_pi, b_pi, w_mu, b_mu, w_sg, b_sg = params[idx:idx + 6]
    pi = jax.nn.softmax(jnp.dot(h, w_pi, precision=hp) + b_pi, axis=1)
    mu = jnp.dot(h, w_mu, precision=hp) + b_mu
    sigma = jnp.exp(jnp.dot(h, w_sg, precision=hp) + b_sg) + sigma_offset
    return pi, mu, sigma


if __name__ == "__main__":
    # Small config consistent with MDN(nx, n_hidden, n_gaussians, n_layers1, 1)
    nx, n_hidden, n_gaussians = 8, 32, 4
    n_layers1 = 2
    sigma_offset = 0.1
    batch = 64

    key = jax.random.PRNGKey(0)
    kx, kp = jax.random.split(key)
    x = jax.random.normal(kx, (batch, nx), dtype=jnp.float32)
    params = init_mdn_params(kp, nx, n_hidden, n_gaussians, n_layers1)
    pi_r, mu_r, sig_r = mdn_reference(
        x, params, n_layers1=n_layers1, sigma_offset=sigma_offset)

    # --- precise path: f32 MXU operands, f32 output slab ---
    prep_f32 = prepare_mdn_params(
        params, n_layers1=n_layers1, n_gaussians=n_gaussians,
        compute_dtype=jnp.float32)
    pi, mu, sigma = mdn_forward(
        x, prep_f32, n_layers1=n_layers1, n_gaussians=n_gaussians,
        sigma_offset=sigma_offset, out_dtype=jnp.float32)
    jax.block_until_ready((pi, mu, sigma))

    assert pi.shape == (batch, n_gaussians)
    assert mu.shape == (batch, n_gaussians)
    assert sigma.shape == (batch, n_gaussians)
    assert jnp.allclose(pi, pi_r, atol=2e-3, rtol=2e-3)
    assert jnp.allclose(mu, mu_r, atol=2e-3, rtol=2e-3)
    assert jnp.allclose(sigma, sig_r, atol=2e-3, rtol=2e-3)
    # exact-divide softmax: rows of pi sum to 1
    assert jnp.allclose(jnp.sum(pi, axis=1), 1.0, atol=1e-4)

    # --- fast path (review defaults): bf16 MXU operands (f32 accumulation)
    #     + bf16 output slab (halved HBM writeback) ---
    prep_bf16 = prepare_mdn_params(
        params, n_layers1=n_layers1, n_gaussians=n_gaussians)  # bf16 default
    pi_f, mu_f, sig_f = mdn_forward(
        x, prep_bf16, n_layers1=n_layers1, n_gaussians=n_gaussians,
        sigma_offset=sigma_offset, out_dtype=jnp.bfloat16)
    jax.block_until_ready((pi_f, mu_f, sig_f))

    assert jnp.allclose(pi_f, pi_r, atol=3e-2, rtol=3e-2)
    assert jnp.allclose(mu_f, mu_r, atol=3e-2, rtol=3e-2)
    assert jnp.allclose(sig_f, sig_r, atol=3e-2, rtol=3e-2)

    print("KERNEL_OK")
</pallas_src>

<mosaic_0001>
module attributes {stable_mosaic.version = 11 : i64} {
  func.func @_mdn_kernel(%arg0: i32, %arg1: memref<16x8xf32, #tpu.memory_space<vmem>>, %arg2: memref<8x32xf32, #tpu.memory_space<vmem>>, %arg3: memref<1x32xf32, #tpu.memory_space<vmem>>, %arg4: memref<32x32xf32, #tpu.memory_space<vmem>>, %arg5: memref<1x32xf32, #tpu.memory_space<vmem>>, %arg6: memref<32x128xf32, #tpu.memory_space<vmem>>, %arg7: memref<1x128xf32, #tpu.memory_space<vmem>>, %arg8: memref<16x128xf32, #tpu.memory_space<vmem>>) attributes {dimension_semantics = [#tpu.dimension_semantics<parallel>], iteration_bounds = array<i64: 4>, scalar_prefetch = 0 : i64, scratch_operands = 0 : i64, tpu.core_type = #tpu.core_type<tc>, window_params = [{transform_indices = @transform_0, window_bounds = array<i64: 16, 8>}, {pipeline_mode = #tpu.pipeline_mode<synchronous>, transform_indices = @transform_1, window_bounds = array<i64: 8, 32>}, {pipeline_mode = #tpu.pipeline_mode<synchronous>, transform_indices = @transform_2, window_bounds = array<i64: 1, 32>}, {pipeline_mode = #tpu.pipeline_mode<synchronous>, transform_indices = @transform_3, window_bounds = array<i64: 32, 32>}, {pipeline_mode = #tpu.pipeline_mode<synchronous>, transform_indices = @transform_4, window_bounds = array<i64: 1, 32>}, {pipeline_mode = #tpu.pipeline_mode<synchronous>, transform_indices = @transform_5, window_bounds = array<i64: 32, 128>}, {pipeline_mode = #tpu.pipeline_mode<synchronous>, transform_indices = @transform_6, window_bounds = array<i64: 1, 128>}, {transform_indices = @transform_7, window_bounds = array<i64: 16, 128>}]} {
    %c0 = arith.constant 0 : index
    %c0_0 = arith.constant 0 : index
    %0 = vector.load %arg1[%c0, %c0_0] : memref<16x8xf32, #tpu.memory_space<vmem>>, vector<16x8xf32>
    %c0_1 = arith.constant 0 : index
    %c0_2 = arith.constant 0 : index
    %1 = vector.load %arg2[%c0_1, %c0_2] : memref<8x32xf32, #tpu.memory_space<vmem>>, vector<8x32xf32>
    %c0_3 = arith.constant 0 : index
    %c0_4 = arith.constant 0 : index
    %2 = vector.load %arg3[%c0_3, %c0_4] : memref<1x32xf32, #tpu.memory_space<vmem>>, vector<1x32xf32>
    %cst = arith.constant dense<0.000000e+00> : vector<16x32xf32>
    %3 = tpu.matmul %0, %1, %cst {dimension_numbers = #tpu.dot_dimension_numbers<[1], [0], [0], [1], [0, 0, 1, 1], [], []>} : vector<16x8xf32>, vector<8x32xf32>, vector<16x32xf32> -> vector<16x32xf32>
    %4 = vector.broadcast %2 : vector<1x32xf32> to vector<16x32xf32>
    %5 = arith.addf %3, %4 : vector<16x32xf32>
    %6 = math.tanh %5 : vector<16x32xf32>
    %c0_5 = arith.constant 0 : index
    %c0_6 = arith.constant 0 : index
    %7 = vector.load %arg4[%c0_5, %c0_6] : memref<32x32xf32, #tpu.memory_space<vmem>>, vector<32x32xf32>
    %c0_7 = arith.constant 0 : index
    %c0_8 = arith.constant 0 : index
    %8 = vector.load %arg5[%c0_7, %c0_8] : memref<1x32xf32, #tpu.memory_space<vmem>>, vector<1x32xf32>
    %cst_9 = arith.constant dense<0.000000e+00> : vector<16x32xf32>
    %9 = tpu.matmul %6, %7, %cst_9 {dimension_numbers = #tpu.dot_dimension_numbers<[1], [0], [0], [1], [0, 0, 1, 1], [], []>} : vector<16x32xf32>, vector<32x32xf32>, vector<16x32xf32> -> vector<16x32xf32>
    %10 = vector.broadcast %8 : vector<1x32xf32> to vector<16x32xf32>
    %11 = arith.addf %9, %10 : vector<16x32xf32>
    %12 = math.tanh %11 : vector<16x32xf32>
    %c0_10 = arith.constant 0 : index
    %c0_11 = arith.constant 0 : index
    %13 = vector.load %arg6[%c0_10, %c0_11] : memref<32x128xf32, #tpu.memory_space<vmem>>, vector<32x128xf32>
    %cst_12 = arith.constant dense<0.000000e+00> : vector<16x128xf32>
    %14 = tpu.matmul %12, %13, %cst_12 {dimension_numbers = #tpu.dot_dimension_numbers<[1], [0], [0], [1], [0, 0, 1, 1], [], []>} : vector<16x32xf32>, vector<32x128xf32>, vector<16x128xf32> -> vector<16x128xf32>
    %c0_13 = arith.constant 0 : index
    %c0_14 = arith.constant 0 : index
    %15 = vector.load %arg7[%c0_13, %c0_14] : memref<1x128xf32, #tpu.memory_space<vmem>>, vector<1x128xf32>
    %16 = vector.broadcast %15 : vector<1x128xf32> to vector<16x128xf32>
    %17 = arith.addf %14, %16 : vector<16x128xf32>
    %18 = tpu.iota {dimensions = array<i32: 1>} : vector<16x128xi32>
    %c4_i32 = arith.constant 4 : i32
    %19 = vector.broadcast %c4_i32 : i32 to vector<16x128xi32>
    %20 = arith.cmpi slt, %18, %19 : vector<16x128xi32>
    %c4_i32_15 = arith.constant 4 : i32
    %21 = vector.broadcast %c4_i32_15 : i32 to vector<16x128xi32>
    %22 = arith.cmpi sge, %18, %21 : vector<16x128xi32>
    %c8_i32 = arith.constant 8 : i32
    %23 = vector.broadcast %c8_i32 : i32 to vector<16x128xi32>
    %24 = arith.cmpi slt, %18, %23 : vector<16x128xi32>
    %25 = arith.andi %22, %24 : vector<16x128xi1>
    %c8_i32_16 = arith.constant 8 : i32
    %26 = vector.broadcast %c8_i32_16 : i32 to vector<16x128xi32>
    %27 = arith.cmpi sge, %18, %26 : vector<16x128xi32>
    %c12_i32 = arith.constant 12 : i32
    %28 = vector.broadcast %c12_i32 : i32 to vector<16x128xi32>
    %29 = arith.cmpi slt, %18, %28 : vector<16x128xi32>
    %30 = arith.andi %27, %29 : vector<16x128xi1>
    %cst_17 = arith.constant 0xFF800000 : f32
    %31 = vector.broadcast %cst_17 : f32 to vector<16x128xf32>
    %32 = arith.select %20, %17, %31 : vector<16x128xi1>, vector<16x128xf32>
    %cst_18 = arith.constant dense<0xFF800000> : vector<16xf32>
    %33 = vector.multi_reduction <maximumf>, %32, %cst_18 [1] : vector<16x128xf32> to vector<16xf32>
    %34 = vector.shape_cast %33 : vector<16xf32> to vector<16x1xf32>
    %cst_19 = arith.constant 0.000000e+00 : f32
    %35 = vector.shape_cast %34 : vector<16x1xf32> to vector<16x1xf32>
    %36 = vector.broadcast %35 : vector<16x1xf32> to vector<16x128xf32>
    %37 = vector.broadcast %cst_19 : f32 to vector<16x128xf32>
    %38 = arith.select %20, %36, %37 : vector<16x128xi1>, vector<16x128xf32>
    %39 = arith.subf %17, %38 : vector<16x128xf32>
    %40 = math.exp %39 : vector<16x128xf32>
    %cst_20 = arith.constant 0.000000e+00 : f32
    %41 = vector.broadcast %cst_20 : f32 to vector<16x128xf32>
    %42 = arith.select %20, %40, %41 : vector<16x128xi1>, vector<16x128xf32>
    %cst_21 = arith.constant dense<0.000000e+00> : vector<16xf32>
    %43 = vector.multi_reduction <add>, %42, %cst_21 [1] : vector<16x128xf32> to vector<16xf32>
    %44 = vector.shape_cast %43 : vector<16xf32> to vector<16x1xf32>
    %cst_22 = arith.constant 1.000000e+00 : f32
    %45 = vector.broadcast %cst_22 : f32 to vector<16x1xf32>
    %46 = arith.divf %45, %44 : vector<16x1xf32>
    %47 = vector.broadcast %46 : vector<16x1xf32> to vector<16x128xf32>
    %48 = arith.mulf %42, %47 : vector<16x128xf32>
    %cst_23 = arith.constant 0.000000e+00 : f32
    %49 = vector.broadcast %cst_23 : f32 to vector<16x128xf32>
    %50 = arith.select %25, %17, %49 : vector<16x128xi1>, vector<16x128xf32>
    %cst_24 = arith.constant 1.000000e-01 : f32
    %51 = vector.broadcast %cst_24 : f32 to vector<16x128xf32>
    %52 = arith.addf %40, %51 : vector<16x128xf32>
    %cst_25 = arith.constant 0.000000e+00 : f32
    %53 = vector.broadcast %cst_25 : f32 to vector<16x128xf32>
    %54 = arith.select %30, %52, %53 : vector<16x128xi1>, vector<16x128xf32>
    %55 = arith.addf %48, %50 : vector<16x128xf32>
    %56 = arith.addf %55, %54 : vector<16x128xf32>
    %c0_26 = arith.constant 0 : index
    %c0_27 = arith.constant 0 : index
    %57 = vector.load %arg8[%c0_26, %c0_27] : memref<16x128xf32, #tpu.memory_space<vmem>>, vector<16x128xf32>
    tpu.vector_store %arg8[%c0_26, %c0_27], %56 {strides = array<i32>} : memref<16x128xf32, #tpu.memory_space<vmem>>, vector<16x128xf32>,
    return
  }
  func.func @transform_0(%arg0: i32) -> (i32, i32) {
    %c0_i32 = arith.constant 0 : i32
    %c0_i32_0 = arith.constant 0 : i32
    return %arg0, %c0_i32 : i32, i32
  }
  func.func @transform_1(%arg0: i32) -> (i32, i32) {
    %c0_i32 = arith.constant 0 : i32
    %c0_i32_0 = arith.constant 0 : i32
    %c0_i32_1 = arith.constant 0 : i32
    return %c0_i32, %c0_i32_0 : i32, i32
  }
  func.func @transform_2(%arg0: i32) -> (i32, i32) {
    %c0_i32 = arith.constant 0 : i32
    %c0_i32_0 = arith.constant 0 : i32
    %c0_i32_1 = arith.constant 0 : i32
    return %c0_i32, %c0_i32_0 : i32, i32
  }
  func.func @transform_3(%arg0: i32) -> (i32, i32) {
    %c0_i32 = arith.constant 0 : i32
    %c0_i32_0 = arith.constant 0 : i32
    %c0_i32_1 = arith.constant 0 : i32
    return %c0_i32, %c0_i32_0 : i32, i32
  }
  func.func @transform_4(%arg0: i32) -> (i32, i32) {
    %c0_i32 = arith.constant 0 : i32
    %c0_i32_0 = arith.constant 0 : i32
    %c0_i32_1 = arith.constant 0 : i32
    return %c0_i32, %c0_i32_0 : i32, i32
  }
  func.func @transform_5(%arg0: i32) -> (i32, i32) {
    %c0_i32 = arith.constant 0 : i32
    %c0_i32_0 = arith.constant 0 : i32
    %c0_i32_1 = arith.constant 0 : i32
    return %c0_i32, %c0_i32_0 : i32, i32
  }
  func.func @transform_6(%arg0: i32) -> (i32, i32) {
    %c0_i32 = arith.constant 0 : i32
    %c0_i32_0 = arith.constant 0 : i32
    %c0_i32_1 = arith.constant 0 : i32
    return %c0_i32, %c0_i32_0 : i32, i32
  }
  func.func @transform_7(%arg0: i32) -> (i32, i32) {
    %c0_i32 = arith.constant 0 : i32
    %c0_i32_0 = arith.constant 0 : i32
    return %arg0, %c0_i32 : i32, i32
  }
}

</mosaic_0001>

<llo_original>
// kernel: mdn_forward.1
$region0: #{mdn_forward.1}
  #allocation0 [shape = 'u32[]', space=smem, size = 0x4, offset = 0x4, fixed_abs, tag = 'smem constant byte address 0x4 - core index']
  #allocation1 [shape = 'u32[144,128]{1,0:T(1,128)}', space=vmem, size = 0x12000, scoped, tag = 'internal scratch']
  %s0 = inlined_call_operand.vmem [shape: f32[64,8], index: 0, kind: input, shape index: {}]
  %s1 = inlined_call_operand.vmem [shape: f32[8,32], index: 1, kind: input, shape index: {}]
  %s2 = inlined_call_operand.vmem [shape: f32[1,32], index: 2, kind: input, shape index: {}]
  %s3 = inlined_call_operand.vmem [shape: f32[32,32], index: 3, kind: input, shape index: {}]
  %s4 = inlined_call_operand.vmem [shape: f32[1,32], index: 4, kind: input, shape index: {}]
  %s5 = inlined_call_operand.vmem [shape: f32[32,128], index: 5, kind: input, shape index: {}]
  %s6 = inlined_call_operand.vmem [shape: f32[1,128], index: 6, kind: input, shape index: {}]
  %s7 = inlined_call_operand.vmem [shape: f32[64,128], index: 7, kind: output, shape index: {}]
  %s8 = sld [smem:[#allocation0]]
  $region61: #{mdn_forward.1} parent=0
    _
  %s10 = ssub.s32 1, %s8
  %s11 = scalar_select 0, %s10, %s8
  loop: start=0, step=1, limit=6
  $region2: #{mdn_forward.1} parent=0 // loop_pre_header
    _
  $region3: #{mdn_forward.1} parent=0 // loop_header
    %s13 = sphi 0, %s17
    %p14 = scmp.ge.s32.totalorder %s13, 6
    %s23 = sphi 0, %s25
    %s26 = sphi 0, %s23
    %s27 = sphi 0, %s26
    %s43 = sphi 0, %s27
    %s47 = sphi 0, %s47
    %s49 = sphi 0, %s47
    %s50 = sphi 0, %s49
    %s64 = sphi 0, %s50
    %s68 = sphi 0, %s68
    %s70 = sphi 0, %s68
    %s71 = sphi 0, %s70
    %s85 = sphi 0, %s71
    %s89 = sphi 0, %s89
    %s91 = sphi 0, %s89
    %s92 = sphi 0, %s91
    %s106 = sphi 0, %s92
    %s110 = sphi 0, %s110
    %s112 = sphi 0, %s110
    %s113 = sphi 0, %s112
    %s127 = sphi 0, %s113
    %s131 = sphi 0, %s131
    %s133 = sphi 0, %s131
    %s134 = sphi 0, %s133
    %s148 = sphi 0, %s134
    %s152 = sphi 0, %s152
    %s154 = sphi 0, %s152
    %s155 = sphi 0, %s154
    %s169 = sphi 0, %s155
    %s175 = sphi 0, %s177
    %s178 = sphi 0, %s175
    %s179 = sphi 0, %s178
    %s195 = sphi 0, %s179
  $region4: #{mdn_forward.1} parent=0 // loop_header_branch
    %16 = sbr.rel (%p14) target = $region8
  $region5: #{mdn_forward.1} parent=0 // loop_body
    %s18 = ssub.s32 %s13, 1
    %s19 = ssub.s32 %s13, 2
    %s20 = sadd.s32 %s13, 1
    %s21 = ssub.s32 %s13, %s20
    %p22 = scmp.eq.s32.totalorder %s21, 0
    %s24 = sadd.s32 %s23, 1
    %s25 = scalar_select %p22, %s23, %s24
    %p28 = pneg %p22
    %p29 = scmp.eq.s32.totalorder %s13, 3
    %p30 = por %p28, %p29
    %p31 = scmp.ne.s32.totalorder %s23, %s26
    %p32 = scmp.eq.s32.totalorder %s13, 0
    %p33 = por %p31, %p32
    %p34 = scmp.ne.s32.totalorder %s23, %s26
    %p35 = scmp.eq.s32.totalorder %s18, 3
    %p36 = por %p34, %p35
    %p37 = scmp.ne.s32.totalorder %s26, %s27
    %p38 = scmp.eq.s32.totalorder %s18, 0
    %p39 = por %p37, %p38
    %p40 = scmp.ne.s32.totalorder %s26, %s27
    %p41 = scmp.eq.s32.totalorder %s19, 3
    %p42 = por %p40, %p41
    %p44 = scmp.ne.s32.totalorder %s27, %s43
    %p45 = scmp.eq.s32.totalorder %s19, 0
    %p46 = por %p44, %p45
    %s48 = sadd.s32 %s47, 1
    %p51 = scmp.eq.s32.totalorder %s13, 3
    %p52 = scmp.ne.s32.totalorder %s47, %s49
    %p53 = scmp.eq.s32.totalorder %s13, 0
    %p54 = por %p52, %p53
    %p55 = scmp.ne.s32.totalorder %s47, %s49
    %p56 = scmp.eq.s32.totalorder %s18, 3
    %p57 = por %p55, %p56
    %p58 = scmp.ne.s32.totalorder %s49, %s50
    %p59 = scmp.eq.s32.totalorder %s18, 0
    %p60 = por %p58, %p59
    %p61 = scmp.ne.s32.totalorder %s49, %s50
    %p62 = scmp.eq.s32.totalorder %s19, 3
    %p63 = por %p61, %p62
    %p65 = scmp.ne.s32.totalorder %s50, %s64
    %p66 = scmp.eq.s32.totalorder %s19, 0
    %p67 = por %p65, %p66
    %s69 = sadd.s32 %s68, 1
    %p72 = scmp.eq.s32.totalorder %s13, 3
    %p73 = scmp.ne.s32.totalorder %s68, %s70
    %p74 = scmp.eq.s32.totalorder %s13, 0
    %p75 = por %p73, %p74
    %p76 = scmp.ne.s32.totalorder %s68, %s70
    %p77 = scmp.eq.s32.totalorder %s18, 3
    %p78 = por %p76, %p77
    %p79 = scmp.ne.s32.totalorder %s70, %s71
    %p80 = scmp.eq.s32.totalorder %s18, 0
    %p81 = por %p79, %p80
    %p82 = scmp.ne.s32.totalorder %s70, %s71
    %p83 = scmp.eq.s32.totalorder %s19, 3
    %p84 = por %p82, %p83
    %p86 = scmp.ne.s32.totalorder %s71, %s85
    %p87 = scmp.eq.s32.totalorder %s19, 0
    %p88 = por %p86, %p87
    %s90 = sadd.s32 %s89, 1
    %p93 = scmp.eq.s32.totalorder %s13, 3
    %p94 = scmp.ne.s32.totalorder %s89, %s91
    %p95 = scmp.eq.s32.totalorder %s13, 0
    %p96 = por %p94, %p95
    %p97 = scmp.ne.s32.totalorder %s89, %s91
    %p98 = scmp.eq.s32.totalorder %s18, 3
    %p99 = por %p97, %p98
    %p100 = scmp.ne.s32.totalorder %s91, %s92
    %p101 = scmp.eq.s32.totalorder %s18, 0
    %p102 = por %p100, %p101
    %p103 = scmp.ne.s32.totalorder %s91, %s92
    %p104 = scmp.eq.s32.totalorder %s19, 3
    %p105 = por %p103, %p104
    %p107 = scmp.ne.s32.totalorder %s92, %s106
    %p108 = scmp.eq.s32.totalorder %s19, 0
    %p109 = por %p107, %p108
    %s111 = sadd.s32 %s110, 1
    %p114 = scmp.eq.s32.totalorder %s13, 3
    %p115 = scmp.ne.s32.totalorder %s110, %s112
    %p116 = scmp.eq.s32.totalorder %s13, 0
    %p117 = por %p115, %p116
    %p118 = scmp.ne.s32.totalorder %s110, %s112
    %p119 = scmp.eq.s32.totalorder %s18, 3
    %p120 = por %p118, %p119
    %p121 = scmp.ne.s32.totalorder %s112, %s113
    %p122 = scmp.eq.s32.totalorder %s18, 0
    %p123 = por %p121, %p122
    %p124 = scmp.ne.s32.totalorder %s112, %s113
    %p125 = scmp.eq.s32.totalorder %s19, 3
    %p126 = por %p124, %p125
    %p128 = scmp.ne.s32.totalorder %s113, %s127
    %p129 = scmp.eq.s32.totalorder %s19, 0
    %p130 = por %p128, %p129
    %s132 = sadd.s32 %s131, 1
    %p135 = scmp.eq.s32.totalorder %s13, 3
    %p136 = scmp.ne.s32.totalorder %s131, %s133
    %p137 = scmp.eq.s32.totalorder %s13, 0
    %p138 = por %p136, %p137
    %p139 = scmp.ne.s32.totalorder %s131, %s133
    %p140 = scmp.eq.s32.totalorder %s18, 3
    %p141 = por %p139, %p140
    %p142 = scmp.ne.s32.totalorder %s133, %s134
    %p143 = scmp.eq.s32.totalorder %s18, 0
    %p144 = por %p142, %p143
    %p145 = scmp.ne.s32.totalorder %s133, %s134
    %p146 = scmp.eq.s32.totalorder %s19, 3
    %p147 = por %p145, %p146
    %p149 = scmp.ne.s32.totalorder %s134, %s148
    %p150 = scmp.eq.s32.totalorder %s19, 0
    %p151 = por %p149, %p150
    %s153 = sadd.s32 %s152, 1
    %p156 = scmp.eq.s32.totalorder %s13, 3
    %p157 = scmp.ne.s32.totalorder %s152, %s154
    %p158 = scmp.eq.s32.totalorder %s13, 0
    %p159 = por %p157, %p158
    %p160 = scmp.ne.s32.totalorder %s152, %s154
    %p161 = scmp.eq.s32.totalorder %s18, 3
    %p162 = por %p160, %p161
    %p163 = scmp.ne.s32.totalorder %s154, %s155
    %p164 = scmp.eq.s32.totalorder %s18, 0
    %p165 = por %p163, %p164
    %p166 = scmp.ne.s32.totalorder %s154, %s155
    %p167 = scmp.eq.s32.totalorder %s19, 3
    %p168 = por %p166, %p167
    %p170 = scmp.ne.s32.totalorder %s155, %s169
    %p171 = scmp.eq.s32.totalorder %s19, 0
    %p172 = por %p170, %p171
    %s173 = ssub.s32 %s13, %s20
    %p174 = scmp.eq.s32.totalorder %s173, 0
    %s176 = sadd.s32 %s175, 1
    %s177 = scalar_select %p174, %s175, %s176
    %p180 = pneg %p174
    %p181 = scmp.eq.s32.totalorder %s13, 3
    %p182 = por %p180, %p181
    %p183 = scmp.ne.s32.totalorder %s175, %s178
    %p184 = scmp.eq.s32.totalorder %s13, 0
    %p185 = por %p183, %p184
    %p186 = scmp.ne.s32.totalorder %s175, %s178
    %p187 = scmp.eq.s32.totalorder %s18, 3
    %p188 = por %p186, %p187
    %p189 = scmp.ne.s32.totalorder %s178, %s179
    %p190 = scmp.eq.s32.totalorder %s18, 0
    %p191 = por %p189, %p190
    %p192 = scmp.ne.s32.totalorder %s178, %s179
    %p193 = scmp.eq.s32.totalorder %s19, 3
    %p194 = por %p192, %p193
    %p196 = scmp.ne.s32.totalorder %s179, %s195
    %p197 = scmp.eq.s32.totalorder %s19, 0
    %p198 = por %p196, %p197
    %p199 = scmp.le.s32.totalorder 1, %s13
    %p200 = scmp.lt.s32.totalorder %s13, 5
    %p201 = pnand %p199, %p200
    %p202 = pneg %p201
    // Predicated region
    $region9: #{mdn_forward.1} parent=5 // pred_check
      _
    $region10: #{mdn_forward.1} parent=5 // pred_check_branch
      %204 = sbr.rel (%p201) target = $region12
    $region11: #{mdn_forward.1} parent=5 // pred_region
      %s205 = ssub.s32 %s13, 1
      // Predicated region
      $region13: #{mdn_forward.1} parent=11 // pred_check
        %p206 = pneg %p60
      $region14: #{mdn_forward.1} parent=11 // pred_check_branch
        %208 = sbr.rel (%p206) target = $region16
      $region15: #{mdn_forward.1} parent=11 // pred_region
        _
      $region16: #{mdn_forward.1} parent=11 // pred_fallthru
        _
      // Predicated region
      $region17: #{mdn_forward.1} parent=11 // pred_check
        %p209 = pneg %p81
      $region18: #{mdn_forward.1} parent=11 // pred_check_branch
        %211 = sbr.rel (%p209) target = $region20
      $region19: #{mdn_forward.1} parent=11 // pred_region
        _
      $region20: #{mdn_forward.1} parent=11 // pred_fallthru
        _
      // Predicated region
      $region21: #{mdn_forward.1} parent=11 // pred_check
        %p212 = pneg %p102
      $region22: #{mdn_forward.1} parent=11 // pred_check_branch
        %214 = sbr.rel (%p212) target = $region24
      $region23: #{mdn_forward.1} parent=11 // pred_region
        _
      $region24: #{mdn_forward.1} parent=11 // pred_fallthru
        _
      // Predicated region
      $region25: #{mdn_forward.1} parent=11 // pred_check
        %p215 = pneg %p123
      $region26: #{mdn_forward.1} parent=11 // pred_check_branch
        %217 = sbr.rel (%p215) target = $region28
      $region27: #{mdn_forward.1} parent=11 // pred_region
        _
      $region28: #{mdn_forward.1} parent=11 // pred_fallthru
        _
      // Predicated region
      $region29: #{mdn_forward.1} parent=11 // pred_check
        %p218 = pneg %p144
      $region30: #{mdn_forward.1} parent=11 // pred_check_branch
        %220 = sbr.rel (%p218) target = $region32
      $region31: #{mdn_forward.1} parent=11 // pred_region
        _
      $region32: #{mdn_forward.1} parent=11 // pred_fallthru
        _
      // Predicated region
      $region33: #{mdn_forward.1} parent=11 // pred_check
        %p221 = pneg %p165
      $region34: #{mdn_forward.1} parent=11 // pred_check_branch
        %223 = sbr.rel (%p221) target = $region36
      $region35: #{mdn_forward.1} parent=11 // pred_region
        _
      $region36: #{mdn_forward.1} parent=11 // pred_fallthru
        _
    $region12: #{mdn_forward.1} parent=5 // pred_fallthru
      _
    %p224 = scmp.lt.s32.totalorder %s13, 4
    // Predicated region
    $region37: #{mdn_forward.1} parent=5 // pred_check
      %p225 = pneg %p224
    $region38: #{mdn_forward.1} parent=5 // pred_check_branch
      %227 = sbr.rel (%p225) target = $region40
    $region39: #{mdn_forward.1} parent=5 // pred_region
      // Predicated region
      $region41: #{mdn_forward.1} parent=39 // pred_check
        %p228 = pneg %p33
      $region42: #{mdn_forward.1} parent=39 // pred_check_branch
        %230 = sbr.rel (%p228) target = $region44
      $region43: #{mdn_forward.1} parent=39 // pred_region
        %s231 = smul.u32 2, %s13
        %p232 = scmp.lt.s32.totalorder %s231, 7
        %s233 = scalar_select %p232, %s231, 7
        %s234 = smul.addr %s233, 8
        %s235 = scalar_lea.vmem %s0, %s234
        %s236 = smul.u32 2, %s13
      $region44: #{mdn_forward.1} parent=39 // pred_fallthru
        _
    $region40: #{mdn_forward.1} parent=5 // pred_fallthru
      _
    %p237 = scmp.le.s32.totalorder 1, %s13
    %p238 = scmp.lt.s32.totalorder %s13, 5
    %p239 = pnand %p237, %p238
    %p240 = pneg %p239
    // Predicated region
    $region45: #{mdn_forward.1} parent=5 // pred_check
      _
    $region46: #{mdn_forward.1} parent=5 // pred_check_branch
      %242 = sbr.rel (%p239) target = $region48
    $region47: #{mdn_forward.1} parent=5 // pred_region
      %s243 = ssub.s32 %s13, 1
      %s244 = smul.u32 2, %s18
      %p245 = scmp.lt.s32.totalorder %s244, 7
      %s246 = scalar_select %p245, %s244, 7
      %s247 = smul.addr %s246, 8
      %s248 = scalar_lea.vmem %s0, %s247
      %p249 = pneg %p39
      %p250 = pneg %p36
      %p251 = pneg %p60
      %p252 = pneg %p57
      %p253 = pneg %p81
      %p254 = pneg %p78
      %p255 = pneg %p102
      %p256 = pneg %p99
      %p257 = pneg %p123
      %p258 = pneg %p120
      %p259 = pneg %p144
      %p260 = pneg %p141
      %p261 = pneg %p165
      %p262 = pneg %p162
      %p263 = pneg %p191
      %p264 = pneg %p188
      %s265 = smul.u32 2, %s18
      %p266 = scmp.lt.s32.totalorder %s265, 7
      %s267 = scalar_select %p266, %s265, 7
      %s268 = smul.addr %s267, 8
      %s269 = scalar_lea.vmem %s7, %s268
      %s270 = smul.u32 2, %s18
      %p271 = scmp.lt.s32.totalorder %s270, 7
      %s272 = scalar_select %p271, %s270, 7
      %s273 = smul.addr %s272, 8
      %s274 = scalar_lea.vmem %s0, %s273
      %s275 = smul.u32 2, %s18
      %s276 = smul.u32 2, %s18
      %p277 = scmp.lt.s32.totalorder %s276, 7
      %s278 = scalar_select %p277, %s276, 7
      %s279 = smul.addr %s278, 8
      %s280 = scalar_lea.vmem %s7, %s279
      %s281 = smul.u32 2, %s18
      %v282 = vld [vmem:[%s274] sm:$0xff]
      %v283 = vld [vmem:[%s274 + $0x8] sm:$0xff]
      %v284 = vld [vmem:[%s1] sm:$0xff]
      %v285 = vld [vmem:[%s2] sm:$0x1]
      %v287 = vlaneseq
      %v288 = vshrl.u32 %v287, 7
      %v289 = vsub.s32 0, %v288
      %v290 = vrot.slane %v285, %v289
      %vm292 = vcmask 64512
      %v294 = vsel %vm292, %v282, 0
      %v297 = vsel %vm292, %v283, 0
      %299 = vmatprep.subr.mxu0 0.0
      %300 = vmatpush1.msra.mxu0 %v284
      %301 = vmatprep.subr.mxu0 0.0
      %302 = vmatpush1.msra.mxu0 0.0
      %303 = vmatprep.subr.mxu0 0.0
      %304 = vmatpush1.msra.mxu0 0.0
      %305 = vmatprep.subr.mxu0 0.0
      %306 = vmatpush1.msra.mxu0 0.0
      %307 = vmatprep.subr.mxu0 0.0
      %308 = vmatpush1.msra.mxu0 0.0
      %309 = vmatprep.subr.mxu0 0.0
      %310 = vmatpush1.msra.mxu0 0.0
      %311 = vmatprep.subr.mxu0 0.0
      %312 = vmatpush1.msra.mxu0 0.0
      %313 = vmatprep.subr.mxu0 0.0
      %314 = vmatpush1.msra.mxu0 0.0
      %315 = vmatprep.subr.mxu0 0.0
      %316 = vmatpush1.msra.mxu0 0.0
      %317 = vmatprep.subr.mxu0 0.0
      %318 = vmatpush1.msra.mxu0 0.0
      %319 = vmatprep.subr.mxu0 0.0
      %320 = vmatpush1.msra.mxu0 0.0
      %321 = vmatprep.subr.mxu0 0.0
      %322 = vmatpush1.msra.mxu0 0.0
      %323 = vmatprep.subr.mxu0 0.0
      %324 = vmatpush1.msra.mxu0 0.0
      %325 = vmatprep.subr.mxu0 0.0
      %326 = vmatpush1.msra.mxu0 0.0
      %327 = vmatprep.subr.mxu0 0.0
      %328 = vmatpush1.msra.mxu0 0.0
      %329 = vmatprep.subr.mxu0 0.0
      %330 = vmatpush1.msra.mxu0 0.0
      %331 = vmatprep.subr.mxu0 0.0
      %332 = vmatpush1.msra.mxu0 0.0
      %333 = vmatprep.subr.mxu0 0.0
      %334 = vmatpush1.msra.mxu0 0.0
      %335 = vmatprep.subr.mxu0 0.0
      %336 = vmatpush1.msra.mxu0 0.0
      %337 = vmatprep.subr.mxu0 0.0
      %338 = vmatpush1.msra.mxu0 0.0
      %339 = vmatprep.subr.mxu0 0.0
      %340 = vmatpush1.msra.mxu0 0.0
      %341 = vmatprep.subr.mxu0 0.0
      %342 = vmatpush1.msra.mxu0 0.0
      %343 = vmatprep.subr.mxu0 0.0
      %344 = vmatpush1.msra.mxu0 0.0
      %345 = vmatprep.subr.mxu0 0.0
      %346 = vmatpush1.msra.mxu0 0.0
      %347 = vmatprep.subr.mxu0 0.0
      %348 = vmatpush1.msra.mxu0 0.0
      %349 = vmatprep.subr.mxu0 0.0
      %350 = vmatpush1.msra.mxu0 0.0
      %351 = vmatprep.subr.mxu0 0.0
      %352 = vmatpush1.msra.mxu0 0.0
      %353 = vmatprep.subr.mxu0 0.0
      %354 = vmatpush1.msra.mxu0 0.0
      %355 = vmatprep.subr.mxu0 0.0
      %356 = vmatpush1.msra.mxu0 0.0
      %357 = vmatprep.subr.mxu0 0.0
      %358 = vmatpush1.msra.mxu0 0.0
      %359 = vmatprep.subr.mxu0 0.0
      %360 = vmatpush1.msra.mxu0 0.0
      %361 = vmatprep.subr.mxu0 0.0
      %362 = vmatpush1.msra.mxu0 0.0
      %363 = vmatprep.mubr.f32.mxu0 0.0
      %364 = vmatmul.mubr.f32.gmra.mrb[0].mxu0 %v294
      %v365 = vpop.f32.mrb[0].mxu0
      %v366 = vadd.f32 %v290, %v365
      %v367 = vpop.f32.mrb[0].mxu0
      %368 = vmatprep.mubr.f32.mxu0 0.0
      %369 = vmatmul.mubr.f32.gmra.mrb[0].mxu0 %v297
      %v370 = vpop.f32.mrb[0].mxu0
      %v371 = vadd.f32 %v290, %v370
      %v372 = vpop.f32.mrb[0].mxu0
      %373 = vdwg.mxu0
      %v374 = vtanh.pop %v366
      %v375 = vtanh.pop %v371
      %v376 = vld [vmem:[%s3] sm:$0xff]
      %v377 = vld [vmem:[%s3 + $0x8] sm:$0xff]
      %v378 = vld [vmem:[%s3 + $0x10] sm:$0xff]
      %v379 = vld [vmem:[%s3 + $0x18] sm:$0xff]
      %v380 = vld [vmem:[%s4] sm:$0x1]
      %v382 = vlaneseq
      %v383 = vshrl.u32 %v382, 7
      %v384 = vsub.s32 0, %v383
      %v385 = vrot.slane %v380, %v384
      %vm387 = vcmask 261120
      %v389 = vsel %vm387, %v374, 0
      %v392 = vsel %vm387, %v375, 0
      %394 = vmatprep.subr.mxu0 0.0
      %395 = vmatpush1.msra.mxu0 %v376
      %396 = vmatprep.subr.mxu0 0.0
      %397 = vmatpush1.msra.mxu0 %v377
      %398 = vmatprep.subr.mxu0 0.0
      %399 = vmatpush1.msra.mxu0 %v378
      %400 = vmatprep.subr.mxu0 0.0
      %401 = vmatpush1.msra.mxu0 %v379
      %402 = vmatprep.subr.mxu0 0.0
      %403 = vmatpush1.msra.mxu0 0.0
      %404 = vmatprep.subr.mxu0 0.0
      %405 = vmatpush1.msra.mxu0 0.0
      %406 = vmatprep.subr.mxu0 0.0
      %407 = vmatpush1.msra.mxu0 0.0
      %408 = vmatprep.subr.mxu0 0.0
      %409 = vmatpush1.msra.mxu0 0.0
      %410 = vmatprep.subr.mxu0 0.0
      %411 = vmatpush1.msra.mxu0 0.0
      %412 = vmatprep.subr.mxu0 0.0
      %413 = vmatpush1.msra.mxu0 0.0
      %414 = vmatprep.subr.mxu0 0.0
      %415 = vmatpush1.msra.mxu0 0.0
      %416 = vmatprep.subr.mxu0 0.0
      %417 = vmatpush1.msra.mxu0 0.0
      %418 = vmatprep.subr.mxu0 0.0
      %419 = vmatpush1.msra.mxu0 0.0
      %420 = vmatprep.subr.mxu0 0.0
      %421 = vmatpush1.msra.mxu0 0.0
      %422 = vmatprep.subr.mxu0 0.0
      %423 = vmatpush1.msra.mxu0 0.0
      %424 = vmatprep.subr.mxu0 0.0
      %425 = vmatpush1.msra.mxu0 0.0
      %426 = vmatprep.subr.mxu0 0.0
      %427 = vmatpush1.msra.mxu0 0.0
      %428 = vmatprep.subr.mxu0 0.0
      %429 = vmatpush1.msra.mxu0 0.0
      %430 = vmatprep.subr.mxu0 0.0
      %431 = vmatpush1.msra.mxu0 0.0
      %432 = vmatprep.subr.mxu0 0.0
      %433 = vmatpush1.msra.mxu0 0.0
      %434 = vmatprep.subr.mxu0 0.0
      %435 = vmatpush1.msra.mxu0 0.0
      %436 = vmatprep.subr.mxu0 0.0
      %437 = vmatpush1.msra.mxu0 0.0
      %438 = vmatprep.subr.mxu0 0.0
      %439 = vmatpush1.msra.mxu0 0.0
      %440 = vmatprep.subr.mxu0 0.0
      %441 = vmatpush1.msra.mxu0 0.0
      %442 = vmatprep.subr.mxu0 0.0
      %443 = vmatpush1.msra.mxu0 0.0
      %444 = vmatprep.subr.mxu0 0.0
      %445 = vmatpush1.msra.mxu0 0.0
      %446 = vmatprep.subr.mxu0 0.0
      %447 = vmatpush1.msra.mxu0 0.0
      %448 = vmatprep.subr.mxu0 0.0
      %449 = vmatpush1.msra.mxu0 0.0
      %450 = vmatprep.subr.mxu0 0.0
      %451 = vmatpush1.msra.mxu0 0.0
      %452 = vmatprep.subr.mxu0 0.0
      %453 = vmatpush1.msra.mxu0 0.0
      %454 = vmatprep.subr.mxu0 0.0
      %455 = vmatpush1.msra.mxu0 0.0
      %456 = vmatprep.subr.mxu0 0.0
      %457 = vmatpush1.msra.mxu0 0.0
      %458 = vmatprep.mubr.f32.mxu0 0.0
      %459 = vmatmul.mubr.f32.gmra.mrb[0].mxu0 %v389
      %v460 = vpop.f32.mrb[0].mxu0
      %v461 = vadd.f32 %v385, %v460
      %v462 = vpop.f32.mrb[0].mxu0
      %463 = vmatprep.mubr.f32.mxu0 0.0
      %464 = vmatmul.mubr.f32.gmra.mrb[0].mxu0 %v392
      %v465 = vpop.f32.mrb[0].mxu0
      %v466 = vadd.f32 %v385, %v465
      %v467 = vpop.f32.mrb[0].mxu0
      %468 = vdwg.mxu0
      %v469 = vtanh.pop %v461
      %v470 = vtanh.pop %v466
      %v471 = vld [vmem:[%s5] sm:$0xff]
      %v472 = vld [vmem:[%s5 + $0x8] sm:$0xff]
      %v473 = vld [vmem:[%s5 + $0x10] sm:$0xff]
      %v474 = vld [vmem:[%s5 + $0x18] sm:$0xff]
      %v475 = vld [vmem:[%s6] sm:$0x1]
      %v477 = vlaneseq
      %v478 = vshrl.u32 %v477, 7
      %v479 = vsub.s32 0, %v478
      %v480 = vrot.slane %v475, %v479
      %v483 = vsel %vm387, %v469, 0
      %v486 = vsel %vm387, %v470, 0
      %488 = vmatprep.subr.mxu0 0.0
      %489 = vmatpush1.msra.mxu0 %v471
      %490 = vmatprep.subr.mxu0 0.0
      %491 = vmatpush1.msra.mxu0 %v472
      %492 = vmatprep.subr.mxu0 0.0
      %493 = vmatpush1.msra.mxu0 %v473
      %494 = vmatprep.subr.mxu0 0.0
      %495 = vmatpush1.msra.mxu0 %v474
      %496 = vmatprep.subr.mxu0 0.0
      %497 = vmatpush1.msra.mxu0 0.0
      %498 = vmatprep.subr.mxu0 0.0
      %499 = vmatpush1.msra.mxu0 0.0
      %500 = vmatprep.subr.mxu0 0.0
      %501 = vmatpush1.msra.mxu0 0.0
      %502 = vmatprep.subr.mxu0 0.0
      %503 = vmatpush1.msra.mxu0 0.0
      %504 = vmatprep.subr.mxu0 0.0
      %505 = vmatpush1.msra.mxu0 0.0
      %506 = vmatprep.subr.mxu0 0.0
      %507 = vmatpush1.msra.mxu0 0.0
      %508 = vmatprep.subr.mxu0 0.0
      %509 = vmatpush1.msra.mxu0 0.0
      %510 = vmatprep.subr.mxu0 0.0
      %511 = vmatpush1.msra.mxu0 0.0
      %512 = vmatprep.subr.mxu0 0.0
      %513 = vmatpush1.msra.mxu0 0.0
      %514 = vmatprep.subr.mxu0 0.0
      %515 = vmatpush1.msra.mxu0 0.0
      %516 = vmatprep.subr.mxu0 0.0
      %517 = vmatpush1.msra.mxu0 0.0
      %518 = vmatprep.subr.mxu0 0.0
      %519 = vmatpush1.msra.mxu0 0.0
      %520 = vmatprep.subr.mxu0 0.0
      %521 = vmatpush1.msra.mxu0 0.0
      %522 = vmatprep.subr.mxu0 0.0
      %523 = vmatpush1.msra.mxu0 0.0
      %524 = vmatprep.subr.mxu0 0.0
      %525 = vmatpush1.msra.mxu0 0.0
      %526 = vmatprep.subr.mxu0 0.0
      %527 = vmatpush1.msra.mxu0 0.0
      %528 = vmatprep.subr.mxu0 0.0
      %529 = vmatpush1.msra.mxu0 0.0
      %530 = vmatprep.subr.mxu0 0.0
      %531 = vmatpush1.msra.mxu0 0.0
      %532 = vmatprep.subr.mxu0 0.0
      %533 = vmatpush1.msra.mxu0 0.0
      %534 = vmatprep.subr.mxu0 0.0
      %535 = vmatpush1.msra.mxu0 0.0
      %536 = vmatprep.subr.mxu0 0.0
      %537 = vmatpush1.msra.mxu0 0.0
      %538 = vmatprep.subr.mxu0 0.0
      %539 = vmatpush1.msra.mxu0 0.0
      %540 = vmatprep.subr.mxu0 0.0
      %541 = vmatpush1.msra.mxu0 0.0
      %542 = vmatprep.subr.mxu0 0.0
      %543 = vmatpush1.msra.mxu0 0.0
      %544 = vmatprep.subr.mxu0 0.0
      %545 = vmatpush1.msra.mxu0 0.0
      %546 = vmatprep.subr.mxu0 0.0
      %547 = vmatpush1.msra.mxu0 0.0
      %548 = vmatprep.subr.mxu0 0.0
      %549 = vmatpush1.msra.mxu0 0.0
      %550 = vmatprep.subr.mxu0 0.0
      %551 = vmatpush1.msra.mxu0 0.0
      %552 = vmatprep.mubr.f32.mxu0 0.0
      %553 = vmatmul.mubr.f32.gmra.mrb[0].mxu0 %v483
      %v554 = vpop.f32.mrb[0].mxu0
      %v555 = vadd.f32 %v480, %v554
      %v556 = vpop.f32.mrb[0].mxu0
      %557 = vmatprep.mubr.f32.mxu0 0.0
      %558 = vmatmul.mubr.f32.gmra.mrb[0].mxu0 %v486
      %v559 = vpop.f32.mrb[0].mxu0
      %v560 = vadd.f32 %v480, %v559
      %v561 = vpop.f32.mrb[0].mxu0
      %562 = vdwg.mxu0
      %v563 = vlaneseq
      %v564 = vand.u32 %v563, 127
      %vm565 = vcmp.lt.s32.totalorder %v564, 4
      %vm566 = vcmp.ge.s32.totalorder %v564, 4
      %vm567 = vcmp.lt.s32.totalorder %v564, 8
      %vm568 = vmand %vm566, %vm567
      %vm569 = vcmp.ge.s32.totalorder %v564, 8
      %vm570 = vcmp.lt.s32.totalorder %v564, 12
      %vm571 = vmand %vm569, %vm570
      %v572 = vsel %vm565, %v555, -inf
      %v573 = vsel %vm565, %v560, -inf
      %574 = vmax.xlane.f32.xlu0 %v572
      %v575 = vpop.xlane.xlu0 %574
      %576 = vmax.xlane.f32.xlu0 %v573
      %v577 = vpop.xlane.xlu0 %576
      %v578 = vsel %vm565, %v575, 0.0
      %v579 = vsel %vm565, %v577, 0.0
      %v580 = vsub.f32 %v555, %v578
      %v581 = vsub.f32 %v560, %v579
      %v582 = vmul.f32 %v580, 1.442695
      %v583 = vpow.pop %v582
      %v584 = vmul.f32 %v581, 1.442695
      %v585 = vpow.pop %v584
      %v586 = vsel %vm565, %v583, 0.0
      %v587 = vsel %vm565, %v585, 0.0
      %588 = vadd.xlane.f32.xlu0 %v586
      %v589 = vpop.xlane.xlu0 %588
      %590 = vadd.xlane.f32.xlu0 %v587
      %v591 = vpop.xlane.xlu0 %590
      %v592 = vrcp.pop %v589
      %v593 = vmul.f32 1.0, %v592
      %v594 = vrcp.pop %v591
      %v595 = vmul.f32 1.0, %v594
      %v596 = vmul.f32 %v586, %v593
      %v597 = vmul.f32 %v587, %v595
      %v598 = vsel %vm568, %v555, 0.0
      %v599 = vsel %vm568, %v560, 0.0
      %v600 = vadd.f32 %v583, 0.1
      %v601 = vadd.f32 %v585, 0.1
      %v602 = vsel %vm571, %v600, 0.0
      %v603 = vsel %vm571, %v601, 0.0
      %v604 = vadd.f32 %v596, %v598
      %v605 = vadd.f32 %v597, %v599
      %v606 = vadd.f32 %v604, %v602
      %v607 = vadd.f32 %v605, %v603
      %608 = vst [vmem:[%s280] sm:$0xff] %v606
      %609 = vst [vmem:[%s280 + $0x8] sm:$0xff] %v607
      %s610 = smul.u32 2, %s18
      %p611 = scmp.lt.s32.totalorder %s610, 7
      %s612 = scalar_select %p611, %s610, 7
      %s613 = smul.addr %s612, 8
      %s614 = scalar_lea.vmem %s7, %s613
      // Predicated region
      $region49: #{mdn_forward.1} parent=47 // pred_check
        %p615 = pneg %p188
      $region50: #{mdn_forward.1} parent=47 // pred_check_branch
        %617 = sbr.rel (%p615) target = $region52
      $region51: #{mdn_forward.1} parent=47 // pred_region
        %s618 = smul.u32 2, %s18
      $region52: #{mdn_forward.1} parent=47 // pred_fallthru
        _
    $region48: #{mdn_forward.1} parent=5 // pred_fallthru
      _
    %p619 = scmp.le.s32.totalorder 2, %s13
    // Predicated region
    $region53: #{mdn_forward.1} parent=5 // pred_check
      %p620 = pneg %p619
    $region54: #{mdn_forward.1} parent=5 // pred_check_branch
      %622 = sbr.rel (%p620) target = $region56
    $region55: #{mdn_forward.1} parent=5 // pred_region
      %s623 = ssub.s32 %s13, 2
      // Predicated region
      $region57: #{mdn_forward.1} parent=55 // pred_check
        %p624 = pneg %p194
      $region58: #{mdn_forward.1} parent=55 // pred_check_branch
        %626 = sbr.rel (%p624) target = $region60
      $region59: #{mdn_forward.1} parent=55 // pred_region
        %s627 = smul.u32 2, %s19
        %p628 = scmp.lt.s32.totalorder %s627, 7
        %s629 = scalar_select %p628, %s627, 7
        %s630 = smul.addr %s629, 8
        %s631 = scalar_lea.vmem %s7, %s630
      $region60: #{mdn_forward.1} parent=55 // pred_fallthru
        _
    $region56: #{mdn_forward.1} parent=5 // pred_fallthru
      _
  $region6: #{mdn_forward.1} parent=0 // loop_footer
    %s17 = sadd.s32 1, %s13
  $region7: #{mdn_forward.1} parent=0 // loop_footer_branch
    %12 = sbr.rel target = $region3
  $region8: #{mdn_forward.1} parent=0 // loop_exit
    _

</llo_original>
